<compile_context>
chip_gen: v7x
topology: tpu7x:2x2x1
jax: 0.10.0
libtpu: 0.0.40
codegen_flags: <defaults>
</compile_context>

<pallas_src>
import functools

import jax
import jax.numpy as jnp
from jax.experimental import pallas as pl
from jax.experimental.pallas import tpu as pltpu


# ---------------------------------------------------------------------------
# Kernels
# ---------------------------------------------------------------------------
def _masked_mean_kernel(x_ref, mask_ref, invd_ref, o_ref, acc_ref):
    # x_ref:    (Bt, St, Ht)  input dtype
    # mask_ref: (Bt, St)      f32
    # invd_ref: (Bt, 1)       f32   (precomputed 1 / clamp(sum(mask)))
    # o_ref:    (Bt, Ht)      output dtype
    # acc_ref:  (Bt, Ht)      f32 scratch, resident across the s grid axis
    s = pl.program_id(2)

    @pl.when(s == 0)
    def _():
        acc_ref[...] = jnp.zeros_like(acc_ref)

    x = x_ref[...].astype(jnp.float32)               # (Bt, St, Ht)
    m = mask_ref[...][:, :, None]                    # (Bt, St, 1) lane splat
    acc_ref[...] += jnp.sum(x * m, axis=1)           # (Bt, Ht)

    @pl.when(s == pl.num_programs(2) - 1)
    def _():
        o_ref[...] = (acc_ref[...] * invd_ref[...]).astype(o_ref.dtype)


def _plain_mean_kernel(x_ref, o_ref, acc_ref, *, inv_s):
    # Unmasked path: plain mean over S, same accumulator structure.
    s = pl.program_id(2)

    @pl.when(s == 0)
    def _():
        acc_ref[...] = jnp.zeros_like(acc_ref)

    acc_ref[...] += jnp.sum(x_ref[...].astype(jnp.float32), axis=1)

    @pl.when(s == pl.num_programs(2) - 1)
    def _():
        o_ref[...] = (acc_ref[...] * inv_s).astype(o_ref.dtype)


# ---------------------------------------------------------------------------
# Tile selection / VMEM budgeting
# ---------------------------------------------------------------------------
def _vmem_limit_bytes():
    """Scoped-VMEM limit derived from the chip: ~48 MiB on v7x (64 MiB
    physical), ~96 MiB on v5e/v6e (128 MiB physical)."""
    try:
        cap = pltpu.get_tpu_info().vmem_capacity_bytes
    except Exception:
        cap = 64 * 1024 * 1024          # conservative (v7x-sized) fallback
    return min(int(cap * 3 // 4), 96 * 1024 * 1024)


def _est_vmem_bytes(Bt, St, Ht, esize, masked):
    """Honest per-step VMEM estimate: double-buffered pipelined operands plus
    the in-kernel f32 temporaries (upcast copy + x*m product) and the
    accumulator scratch."""
    x_tile = Bt * St * Ht * esize
    f32_tmp = 2 * Bt * St * Ht * 4                  # upcast + product
    mask_tile = Bt * St * 4 if masked else 0
    invd_tile = 8 * 128 * 4 if masked else 0        # (Bt,1) pads to one (8,128) tile
    out_tile = Bt * Ht * esize
    acc = Bt * Ht * 4
    return 2 * (x_tile + mask_tile + invd_tile + out_tile) + f32_tmp + acc


def _choose_tiles(B, S, H, esize, masked, budget):
    # Bt: 16 for 2-byte dtypes (packed (16,128) output tiles), else 8;
    # full B when not divisible (full-extent block is always legal).
    if esize == 2 and B % 16 == 0:
        Bt = 16
    elif B % 8 == 0:
        Bt = 8
    else:
        Bt = B

    # Ht candidates: full H first (one contiguous DMA per (b, s) row), then
    # 128-multiples that divide H, descending.
    ht_cands = [H]
    if H % 128 == 0:
        ht_cands += [h for h in range(H - 128, 0, -128) if H % h == 0]

    # St candidates: full S first, then 128-multiples that divide S
    # (the mask block's last dim must be a 128-multiple or the full extent).
    st_cands = [S]
    if S % 128 == 0:
        st_cands += [s for s in range(S - 128, 0, -128) if S % s == 0]

    for ht in ht_cands:               # prefer full-H contiguous blocks first
        for st in st_cands:           # then the largest S chunk that fits
            if _est_vmem_bytes(Bt, st, ht, esize, masked) <= budget:
                return Bt, st, ht
    # TODO(synk): if even the smallest tile exceeds the budget (e.g. a huge H
    # that is not a multiple of 128 so it cannot be carved), fall through with
    # the smallest tile and rely on the scoped-VMEM headroom.
    return Bt, st_cands[-1], ht_cands[-1]


# ---------------------------------------------------------------------------
# Wrapper
# ---------------------------------------------------------------------------
def mean_pooling(x, mask=None):
    """Pallas equivalent of MeanPooling.forward.

    x:    [B, S, H]
    mask: optional [B, S]; if None, plain mean over dim=1.
    returns [B, H] (same dtype as x)
    """
    B, S, H = x.shape
    esize = jnp.dtype(x.dtype).itemsize
    masked = mask is not None

    vmem_limit = _vmem_limit_bytes()
    budget = int(vmem_limit * 0.6)                 # headroom for what we miss
    Bt, St, Ht = _choose_tiles(B, S, H, esize, masked, budget)

    # Guarantee >=2 blocks along a "parallel" axis when the (b, h) grid would
    # otherwise collapse to a single block (v7x has two TensorCores).
    if B // Bt == 1 and H // Ht == 1 and H % 128 == 0:
        for h in range(H - 128, 0, -128):
            if H % h == 0:
                Ht = h
                break

    # Grid order: (b, h, s) — the S reduction axis is LAST ("arbitrary"); the
    # output block index (b, h) is constant across it, so the accumulator and
    # output tile stay resident for the whole reduction.
    grid = (B // Bt, H // Ht, S // St)

    compiler_params = pltpu.CompilerParams(
        dimension_semantics=("parallel", "parallel", "arbitrary"),
        vmem_limit_bytes=vmem_limit,
    )
    bytes_accessed = B * S * H * esize + B * H * esize
    if masked:
        bytes_accessed += B * S * 4 + B * 4
    cost = pl.CostEstimate(
        flops=int((2 if masked else 1) * B * S * H),
        transcendentals=0,
        bytes_accessed=int(bytes_accessed),
    )

    out_shape = jax.ShapeDtypeStruct((B, H), x.dtype)
    x_spec = pl.BlockSpec((Bt, St, Ht), lambda b, h, s: (b, s, h))
    out_spec = pl.BlockSpec((Bt, Ht), lambda b, h, s: (b, h))
    scratch = [pltpu.VMEM((Bt, Ht), jnp.float32)]

    if not masked:
        kernel = functools.partial(_plain_mean_kernel, inv_s=1.0 / float(S))
        return pl.pallas_call(
            kernel,
            out_shape=out_shape,
            grid_spec=pltpu.PrefetchScalarGridSpec(
                num_scalar_prefetch=0,
                grid=grid,
                in_specs=[x_spec],
                out_specs=out_spec,
                scratch_shapes=scratch,
            ),
            compiler_params=compiler_params,
            cost_estimate=cost,
        )(x)

    # Masked path: mask stays 2-D [B, S]; precompute the clamped reciprocal of
    # its row-sum once so every H tile reuses it with a single VPU multiply.
    mask_f32 = mask.astype(jnp.float32)                                  # [B, S]
    denom = jnp.maximum(jnp.sum(mask_f32, axis=1, keepdims=True), 1e-9)
    inv_denom = (1.0 / denom).astype(jnp.float32)                        # [B, 1]

    return pl.pallas_call(
        _masked_mean_kernel,
        out_shape=out_shape,
        grid_spec=pltpu.PrefetchScalarGridSpec(
            num_scalar_prefetch=0,
            grid=grid,
            in_specs=[
                x_spec,
                pl.BlockSpec((Bt, St), lambda b, h, s: (b, s)),
                pl.BlockSpec((Bt, 1), lambda b, h, s: (b, 0)),
            ],
            out_specs=out_spec,
            scratch_shapes=scratch,
        ),
        compiler_params=compiler_params,
        cost_estimate=cost,
    )(x, mask_f32, inv_denom)


# ---------------------------------------------------------------------------
# Reference + self-test
# ---------------------------------------------------------------------------
def _ref_mean_pooling(x, mask=None):
    if mask is None:
        return jnp.mean(x.astype(jnp.float32), axis=1).astype(x.dtype)
    m = mask.astype(jnp.float32)
    s = jnp.sum(x.astype(jnp.float32) * m[..., None], axis=1)
    return (s / jnp.maximum(jnp.sum(m, axis=1, keepdims=True), 1e-9)).astype(x.dtype)


if __name__ == "__main__":
    # --- small shapes consistent with the module: B=2, S=8, H=32 ------------
    kx, km = jax.random.split(jax.random.PRNGKey(0))
    B, S, H = 2, 8, 32
    x = jax.random.normal(kx, (B, S, H), dtype=jnp.float32)
    mask = (jax.random.uniform(km, (B, S)) > 0.3).astype(jnp.float32)
    mask = mask.at[:, 0].set(1.0)  # at least one valid token per row

    out_m = jax.block_until_ready(mean_pooling(x, mask))
    assert out_m.shape == (B, H)
    assert jnp.allclose(out_m, _ref_mean_pooling(x, mask), atol=1e-5, rtol=1e-5)

    out_p = jax.block_until_ready(mean_pooling(x, None))
    assert out_p.shape == (B, H)
    assert jnp.allclose(out_p, _ref_mean_pooling(x, None), atol=1e-5, rtol=1e-5)

    # --- larger f32 case exercising the S-reduction grid axis ----------------
    kx2, km2 = jax.random.split(jax.random.PRNGKey(1))
    B2, S2, H2 = 8, 1024, 1024
    x2 = jax.random.normal(kx2, (B2, S2, H2), dtype=jnp.float32)
    mask2 = (jax.random.uniform(km2, (B2, S2)) > 0.5).astype(jnp.float32)
    mask2 = mask2.at[:, 0].set(1.0)

    out2 = jax.block_until_ready(mean_pooling(x2, mask2))
    assert jnp.allclose(out2, _ref_mean_pooling(x2, mask2), atol=1e-4, rtol=1e-4)
    out2p = jax.block_until_ready(mean_pooling(x2, None))
    assert jnp.allclose(out2p, _ref_mean_pooling(x2, None), atol=1e-4, rtol=1e-4)

    # --- bf16 case: Bt=16 packed tiles, f32 accumulate, cast on store --------
    kx3, km3 = jax.random.split(jax.random.PRNGKey(2))
    B3, S3, H3 = 16, 256, 512
    x3 = jax.random.normal(kx3, (B3, S3, H3), dtype=jnp.float32).astype(jnp.bfloat16)
    mask3 = (jax.random.uniform(km3, (B3, S3)) > 0.5).astype(jnp.float32)
    mask3 = mask3.at[:, 0].set(1.0)

    out3 = jax.block_until_ready(mean_pooling(x3, mask3))
    ref3 = _ref_mean_pooling(x3, mask3)
    assert jnp.allclose(out3.astype(jnp.float32), ref3.astype(jnp.float32),
                        atol=2e-2, rtol=2e-2)

    print("KERNEL_OK")
</pallas_src>

<mosaic_0001>
module attributes {stable_mosaic.version = 11 : i64} {
  func.func @_masked_mean_kernel(%arg0: i32, %arg1: i32, %arg2: i32, %arg3: memref<2x8x32xf32, #tpu.memory_space<vmem>>, %arg4: memref<2x8xf32, #tpu.memory_space<vmem>>, %arg5: memref<2x1xf32, #tpu.memory_space<vmem>>, %arg6: memref<2x32xf32, #tpu.memory_space<vmem>>, %arg7: memref<2x32xf32, #tpu.memory_space<vmem>>) attributes {dimension_semantics = [#tpu.dimension_semantics<parallel>, #tpu.dimension_semantics<parallel>, #tpu.dimension_semantics<arbitrary>], iteration_bounds = array<i64: 1, 1, 1>, scalar_prefetch = 0 : i64, scratch_operands = 1 : i64, tpu.core_type = #tpu.core_type<tc>, window_params = [{transform_indices = @transform_0, window_bounds = array<i64: 2, 8, 32>}, {transform_indices = @transform_1, window_bounds = array<i64: 2, 8>}, {transform_indices = @transform_2, window_bounds = array<i64: 2, 1>}, {transform_indices = @transform_3, window_bounds = array<i64: 2, 32>}]} {
    %c0_i32 = arith.constant 0 : i32
    %0 = arith.cmpi eq, %arg2, %c0_i32 : i32
    %1 = arith.extui %0 : i1 to i32
    %c0_i32_0 = arith.constant 0 : i32
    %2 = arith.cmpi ne, %1, %c0_i32_0 : i32
    scf.if %2 {
      %cst_11 = arith.constant 0.000000e+00 : f32
      %15 = vector.broadcast %cst_11 : f32 to vector<2x32xf32>
      %c0_12 = arith.constant 0 : index
      %c0_13 = arith.constant 0 : index
      %16 = vector.load %arg7[%c0_12, %c0_13] : memref<2x32xf32, #tpu.memory_space<vmem>>, vector<2x32xf32>
      tpu.vector_store %arg7[%c0_12, %c0_13], %15 {strides = array<i32>} : memref<2x32xf32, #tpu.memory_space<vmem>>, vector<2x32xf32>,
    } else {
    }
    %c0 = arith.constant 0 : index
    %c0_1 = arith.constant 0 : index
    %c0_2 = arith.constant 0 : index
    %3 = vector.load %arg3[%c0, %c0_1, %c0_2] : memref<2x8x32xf32, #tpu.memory_space<vmem>>, vector<2x8x32xf32>
    %c0_3 = arith.constant 0 : index
    %c0_4 = arith.constant 0 : index
    %4 = vector.load %arg4[%c0_3, %c0_4] : memref<2x8xf32, #tpu.memory_space<vmem>>, vector<2x8xf32>
    %5 = vector.shape_cast %4 : vector<2x8xf32> to vector<2x8x1xf32>
    %c0_5 = arith.constant 0 : index
    %c0_6 = arith.constant 0 : index
    %6 = vector.load %arg7[%c0_5, %c0_6] : memref<2x32xf32, #tpu.memory_space<vmem>>, vector<2x32xf32>
    %7 = vector.broadcast %5 : vector<2x8x1xf32> to vector<2x8x32xf32>
    %8 = arith.mulf %3, %7 : vector<2x8x32xf32>
    %cst = arith.constant dense<0.000000e+00> : vector<2x32xf32>
    %9 = vector.multi_reduction <add>, %8, %cst [1] : vector<2x8x32xf32> to vector<2x32xf32>
    %10 = arith.addf %6, %9 : vector<2x32xf32>
    %c0_7 = arith.constant 0 : index
    %c0_8 = arith.constant 0 : index
    %11 = vector.load %arg7[%c0_7, %c0_8] : memref<2x32xf32, #tpu.memory_space<vmem>>, vector<2x32xf32>
    tpu.vector_store %arg7[%c0_7, %c0_8], %10 {strides = array<i32>} : memref<2x32xf32, #tpu.memory_space<vmem>>, vector<2x32xf32>,
    %c0_i32_9 = arith.constant 0 : i32
    %12 = arith.cmpi eq, %arg2, %c0_i32_9 : i32
    %13 = arith.extui %12 : i1 to i32
    %c0_i32_10 = arith.constant 0 : i32
    %14 = arith.cmpi ne, %13, %c0_i32_10 : i32
    scf.if %14 {
      %c0_11 = arith.constant 0 : index
      %c0_12 = arith.constant 0 : index
      %15 = vector.load %arg7[%c0_11, %c0_12] : memref<2x32xf32, #tpu.memory_space<vmem>>, vector<2x32xf32>
      %c0_13 = arith.constant 0 : index
      %c0_14 = arith.constant 0 : index
      %16 = vector.load %arg5[%c0_13, %c0_14] : memref<2x1xf32, #tpu.memory_space<vmem>>, vector<2x1xf32>
      %17 = vector.broadcast %16 : vector<2x1xf32> to vector<2x32xf32>
      %18 = arith.mulf %15, %17 : vector<2x32xf32>
      %c0_15 = arith.constant 0 : index
      %c0_16 = arith.constant 0 : index
      %19 = vector.load %arg6[%c0_15, %c0_16] : memref<2x32xf32, #tpu.memory_space<vmem>>, vector<2x32xf32>
      tpu.vector_store %arg6[%c0_15, %c0_16], %18 {strides = array<i32>} : memref<2x32xf32, #tpu.memory_space<vmem>>, vector<2x32xf32>,
    } else {
    }
    return
  }
  func.func @transform_0(%arg0: i32, %arg1: i32, %arg2: i32) -> (i32, i32, i32) {
    %c0_i32 = arith.constant 0 : i32
    return %arg0, %arg2, %arg1 : i32, i32, i32
  }
  func.func @transform_1(%arg0: i32, %arg1: i32, %arg2: i32) -> (i32, i32) {
    %c0_i32 = arith.constant 0 : i32
    return %arg0, %arg2 : i32, i32
  }
  func.func @transform_2(%arg0: i32, %arg1: i32, %arg2: i32) -> (i32, i32) {
    %c0_i32 = arith.constant 0 : i32
    %c0_i32_0 = arith.constant 0 : i32
    return %arg0, %c0_i32 : i32, i32
  }
  func.func @transform_3(%arg0: i32, %arg1: i32, %arg2: i32) -> (i32, i32) {
    %c0_i32 = arith.constant 0 : i32
    return %arg0, %arg1 : i32, i32
  }
}

</mosaic_0001>

<llo_original>
// kernel: tpu_custom_call.1
$region0: #{tpu_custom_call.1}
  #allocation0 [shape = 'u32[]', space=smem, size = 0x4, offset = 0x4, fixed_abs, tag = 'smem constant byte address 0x4 - core index']
  #allocation1 [shape = 'u32[144,128]{1,0:T(1,128)}', space=vmem, size = 0x12000, scoped, tag = 'internal scratch']
  #allocation2 [shape = 'f32[2,32]{1,0:T(2,128)}', space=vmem, size = 0x400, scoped, tag = 'scratch operand']
  %s0 = inlined_call_operand.hbm [shape: f32[2,8,32], index: 0, kind: input, shape index: {}]
  %s1 = inlined_call_operand.vmem [shape: f32[2,8], index: 1, kind: input, shape index: {}]
  %s2 = inlined_call_operand.vmem [shape: f32[2,1], index: 2, kind: input, shape index: {}]
  %s3 = inlined_call_operand.hbm [shape: f32[2,32], index: 3, kind: output, shape index: {}]
  %s4 = sld [smem:[#allocation0]]
  $region34: #{tpu_custom_call.1} parent=0
    _
  %s6 = ssub.s32 1, %s4
  %s7 = scalar_select 0, %s6, %s4
  $region1: #{tpu_custom_call.1} parent=0
    #allocation3 [shape = 'u8[8192]{0}', space=vmem, size = 0x2000, scoped, tag = 'input window, operand 0, single buffered']
    #allocation4 [shape = 's32[1]{0}', space=sflag, size = 0x4, scoped, tag = 'scoped memory for tpu_custom_call.1']
    #allocation5 [shape = 's32[1]{0}', space=sflag, size = 0x4, scoped, tag = 'scoped memory for tpu_custom_call.1']
    #allocation6 [shape = 'u8[1024]{0}', space=vmem, size = 0x400, scoped, tag = 'output window, operand 0, single buffered']
    %8 = vsyncpa [#allocation4], 0
    %9 = vsyncpa [#allocation5], 0
    // Predicated region
    $region2: #{tpu_custom_call.1} parent=1 // pred_check
      _
    $region3: #{tpu_custom_call.1} parent=1 // pred_check_branch
      %11 = sbr.rel (0) target = $region5
    $region4: #{tpu_custom_call.1} parent=1 // pred_region
      %s13 = ssub.s32 256, 256
      %14 = vsyncadd [#allocation4], %s13
      %s15 = sshll.u32 [#allocation3], 4
      %s16 = int_to_ptr.vmem [resolvable:$true] %s15
      %21 = dma.hbm_to_vmem [thread:$0]  %s0, 256, %s16, [#allocation4], 128, 128, 8
    $region5: #{tpu_custom_call.1} parent=1 // pred_fallthru
      _
    // Predicated region
    $region6: #{tpu_custom_call.1} parent=1 // pred_check
      _
    $region7: #{tpu_custom_call.1} parent=1 // pred_check_branch
      %23 = sbr.rel (0) target = $region9
    $region8: #{tpu_custom_call.1} parent=1 // pred_region
      _
    $region9: #{tpu_custom_call.1} parent=1 // pred_fallthru
      _
    // Predicated region
    $region10: #{tpu_custom_call.1} parent=1 // pred_check
      _
    $region11: #{tpu_custom_call.1} parent=1 // pred_check_branch
      %25 = sbr.rel (0) target = $region13
    $region12: #{tpu_custom_call.1} parent=1 // pred_region
      _
    $region13: #{tpu_custom_call.1} parent=1 // pred_fallthru
      _
    // Predicated region
    $region14: #{tpu_custom_call.1} parent=1 // pred_check
      _
    $region15: #{tpu_custom_call.1} parent=1 // pred_check_branch
      %27 = sbr.rel (0) target = $region17
    $region16: #{tpu_custom_call.1} parent=1 // pred_region
      %28 = dma.done [#allocation4], 256
    $region17: #{tpu_custom_call.1} parent=1 // pred_fallthru
      _
    %p29 = scmp.eq.s32.totalorder 0, 0
    // Predicated region
    $region18: #{tpu_custom_call.1} parent=1 // pred_check
      %p30 = pneg %p29
    $region19: #{tpu_custom_call.1} parent=1 // pred_check_branch
      %32 = sbr.rel (%p30) target = $region21
    $region20: #{tpu_custom_call.1} parent=1 // pred_region
      %vm33 = vcmask 254976
      %34 = vst.msk [vmem:[#allocation2] sm:$0x3] %vm33, 0.0
    $region21: #{tpu_custom_call.1} parent=1 // pred_fallthru
      _
    %v35 = vld [vmem:[#allocation3] sm:$0xff]
    %v36 = vld [vmem:[#allocation3 + $0x8] sm:$0xff]
    %v37 = vld [vmem:[%s1] sm:$0x3]
    %v38 = vlaneseq
    %v39 = vshrl.u32 %v38, 7
    %v40 = vsub.s32 0, %v39
    %v41 = vrot.slane %v37, %v40
    %43 = vbcast.lane.b32.xlu0 %v41, 256
    %v44 = vpop.permute.xlu0 %43
    %v45 = vlaneseq
    %v46 = vshrl.u32 %v45, 7
    %v47 = vsub.s32 1, %v46
    %v48 = vrot.slane %v37, %v47
    %50 = vbcast.lane.b32.xlu0 %v48, 256
    %v51 = vpop.permute.xlu0 %50
    %v52 = vld [vmem:[#allocation2] sm:$0x3]
    %v53 = vmul.f32 %v35, %v44
    %v54 = vmul.f32 %v36, %v51
    %vm55 = vcmask 261120
    %v56 = vsel %vm55, %v53, 0.0
    %v57 = vrot.slane %v56, 4
    %v58 = vadd.f32 %v56, %v57
    %v59 = vrot.slane %v58, 2
    %v60 = vadd.f32 %v58, %v59
    %v61 = vrot.slane %v60, 1
    %v62 = vadd.f32 %v60, %v61
    %v63 = vsel %vm55, %v54, 0.0
    %v64 = vrot.slane %v63, 4
    %v65 = vadd.f32 %v63, %v64
    %v66 = vrot.slane %v65, 2
    %v67 = vadd.f32 %v65, %v66
    %v68 = vrot.slane %v67, 1
    %v69 = vadd.f32 %v67, %v68
    %vm72 = vcmask 1041409
    %v73 = vsel %vm72, %v69, %v62
    %v75 = vadd.f32 %v52, %v73
    %vm76 = vcmask 254976
    %77 = vst.msk [vmem:[#allocation2] sm:$0x3] %vm76, %v75
    // Predicated region
    $region22: #{tpu_custom_call.1} parent=1 // pred_check
      %p78 = pneg %p29
    $region23: #{tpu_custom_call.1} parent=1 // pred_check_branch
      %80 = sbr.rel (%p78) target = $region25
    $region24: #{tpu_custom_call.1} parent=1 // pred_region
      %v81 = vld [vmem:[#allocation2] sm:$0x3]
      %v82 = vld [vmem:[%s2] sm:$0x3]
      %84 = vset.pattern.permute.xlu0 0
      %85 = vperm.xlu0 %84, %v82
      %v86 = vpop.permute.xlu0 %85
      %v88 = vmul.f32 %v81, %v86
      %89 = vst.msk [vmem:[#allocation6] sm:$0x3] %vm76, %v88
    $region25: #{tpu_custom_call.1} parent=1 // pred_fallthru
      _
    // Predicated region
    $region26: #{tpu_custom_call.1} parent=1 // pred_check
      _
    $region27: #{tpu_custom_call.1} parent=1 // pred_check_branch
      %91 = sbr.rel (0) target = $region29
    $region28: #{tpu_custom_call.1} parent=1 // pred_region
      %s93 = ssub.s32 32, 32
      %94 = vsyncadd [#allocation5], %s93
      %s96 = sshll.u32 [#allocation6], 4
      %s97 = int_to_ptr.vmem [resolvable:$true] %s96
      %99 = dma.vmem_to_hbm [thread:$0]  %s97, 32, %s3, [#allocation5]
    $region29: #{tpu_custom_call.1} parent=1 // pred_fallthru
      _
    // Predicated region
    $region30: #{tpu_custom_call.1} parent=1 // pred_check
      _
    $region31: #{tpu_custom_call.1} parent=1 // pred_check_branch
      %101 = sbr.rel (0) target = $region33
    $region32: #{tpu_custom_call.1} parent=1 // pred_region
      %102 = dma.done [#allocation5], 32
    $region33: #{tpu_custom_call.1} parent=1 // pred_fallthru
      _
    %103 = vsyncpa [#allocation4], 1
    %104 = vsyncpa [#allocation5], 1

</llo_original>
